<compile_context>
chip_gen: v7x
topology: tpu7x:2x2x1
jax: 0.10.0
libtpu: 0.0.40
codegen_flags: <defaults>
</compile_context>

<pallas_src>
import functools
import math

import jax
import jax.numpy as jnp
from jax.experimental import pallas as pl
from jax.experimental.pallas import tpu as pltpu

MIB = 1024 * 1024


# --------------------------------------------------------------------------------------
# Pass 1: fused QKV projection (hoisted out of the flash kernel).
# Emits Q (pre-scaled), K, V in head-major (B, H, S, D) layout.
# --------------------------------------------------------------------------------------
def _qkv_proj_kernel(num_heads, scale, x_ref, wqkv_ref, bqkv_ref, q_ref, k_ref, v_ref):
    H = num_heads
    x = x_ref[0]                                                     # (ts, E)
    E = x.shape[-1]
    D = E // H
    p = jnp.dot(x, wqkv_ref[...],
                preferred_element_type=jnp.float32) + bqkv_ref[0]    # (ts, 3E) f32
    # Split the fused projection into per-head (ts, D) slabs and store head-major.
    # Static Python loop: H is small and this runs once per token (not per q-tile).
    for h in range(H):
        q_ref[0, h] = (p[:, h * D:(h + 1) * D] * scale).astype(q_ref.dtype)
        k_ref[0, h] = p[:, E + h * D:E + (h + 1) * D].astype(k_ref.dtype)
        v_ref[0, h] = p[:, 2 * E + h * D:2 * E + (h + 1) * D].astype(v_ref.dtype)


# --------------------------------------------------------------------------------------
# Pass 2: flash attention (online softmax) + fused output projection.
# grid = (batch, q-tile, kv-tile); KV is the innermost "arbitrary" reduction axis.
# --------------------------------------------------------------------------------------
def _flash_attention_kernel(approx_recip, q_ref, k_ref, v_ref, wo_ref, bo_ref,
                            o_ref, acc_ref, m_ref, l_ref):
    ki = pl.program_id(2)
    nk = pl.num_programs(2)

    @pl.when(ki == 0)
    def _init():
        m_ref[...] = jnp.full_like(m_ref, -jnp.inf)
        l_ref[...] = jnp.zeros_like(l_ref)
        acc_ref[...] = jnp.zeros_like(acc_ref)

    q = q_ref[0]                       # (H, tq, D), already scaled by 1/sqrt(D)
    k = k_ref[0]                       # (H, tk, D)
    v = v_ref[0]                       # (H, tk, D)

    # Head-batched matmuls: one 3-D dot_general instead of H thin D-wide matmuls.
    s = jnp.einsum('hqd,hkd->hqk', q, k,
                   preferred_element_type=jnp.float32)               # (H, tq, tk) f32

    m_prev = m_ref[...]                                               # (H, tq, 1)
    m_new = jnp.maximum(m_prev, jnp.max(s, axis=-1, keepdims=True))
    alpha = jnp.exp(m_prev - m_new)                                   # f32 softmax math
    p = jnp.exp(s - m_new)
    l_ref[...] = alpha * l_ref[...] + jnp.sum(p, axis=-1, keepdims=True)
    m_ref[...] = m_new
    pv = jnp.einsum('hqk,hkd->hqd', p.astype(v.dtype), v,
                    preferred_element_type=jnp.float32)               # (H, tq, D) f32
    acc_ref[...] = alpha * acc_ref[...] + pv                          # full-block update

    @pl.when(ki == nk - 1)
    def _finalize():
        H, tq, _ = acc_ref.shape
        E_out = wo_ref.shape[-1]
        # One full-width normalize pass, folded into the cast feeding the output matmul.
        inv_l = pl.reciprocal(l_ref[...], approx=approx_recip)        # (H, tq, 1)
        attn = (acc_ref[...] * inv_l).astype(wo_ref.dtype)            # (H, tq, D)
        # Output projection without un-transposing heads: wo is reshaped to (H, D, E)
        # in the wrapper, so y = sum_h attn[h] @ wo[h].  Epilogue only (once per q-tile).
        y = jnp.zeros((tq, E_out), jnp.float32)
        for h in range(H):
            y = y + jnp.dot(attn[h], wo_ref[h], preferred_element_type=jnp.float32)
        o_ref[0] = (y + bo_ref[0]).astype(o_ref.dtype)


def attention_forward(x, params, num_heads, *, q_tile=None, kv_tile=None, seq_tile=None,
                      compute_dtype=jnp.bfloat16, vmem_limit_bytes=None):
    """Multi-head self-attention forward matching the PyTorch module.

    x: (B, S, E).  params: (E, E) weights in (in, out) layout and (1, E) biases.
    compute_dtype: matmul-input dtype.  bf16 (default) runs the MXU at full rate on
    v5e/v6e/v7x with f32 accumulation and f32 softmax math; pass jnp.float32 for strict
    (1e-4) agreement with an f32 reference.
    """
    B, S, E = x.shape
    assert E % num_heads == 0
    H = num_heads
    D = E // H
    scale = D ** (-0.5)

    # Tile defaults sized for the 256x256-MXU generations (v6e/v7x).  On v5e (128x128
    # MXU, single TensorCore) pass q_tile=128.
    tq = q_tile if q_tile is not None else min(S, 256)
    tk = kv_tile if kv_tile is not None else min(S, 512)
    ts = seq_tile if seq_tile is not None else min(S, 512)
    assert S % tq == 0 and S % tk == 0 and S % ts == 0, \
        "seq length must be divisible by the tile sizes"
    nq, nk = S // tq, S // tk

    compute_dtype = jnp.dtype(compute_dtype)
    # Approx (EUP) reciprocal only in low-precision mode; exact reciprocal in f32 mode
    # so the strict reference check holds.
    approx_recip = compute_dtype != jnp.dtype(jnp.float32)

    # Fused QKV weight/bias -> one wide (E, 3E) matmul per sequence tile in pass 1.
    wqkv = jnp.concatenate([params["wq"], params["wk"], params["wv"]], axis=1)  # (E, 3E)
    bqkv = jnp.concatenate([params["bq"], params["bk"], params["bv"]], axis=1)  # (1, 3E)
    wo3 = params["wo"].reshape(H, D, E)   # rows grouped per head: y = sum_h attn_h @ wo3[h]
    bo = params["bo"]

    x_in = x.astype(compute_dtype)
    wqkv = wqkv.astype(compute_dtype)
    wo3 = wo3.astype(compute_dtype)

    # --- size-derived VMEM limit (clamped to v7x's 64 MiB physical VMEM). -------------
    cb = compute_dtype.itemsize
    ob = jnp.dtype(x.dtype).itemsize
    if vmem_limit_bytes is None:
        proj_est = (2 * ts * E * cb                  # x blocks (double buffered)
                    + 2 * E * 3 * E * cb             # wqkv (grid-invariant, 2 buffers)
                    + 2 * 3 * E * 4                  # bqkv (f32)
                    + 2 * 3 * H * ts * D * cb        # q/k/v output blocks
                    + 2 * ts * 3 * E * 4)            # in-kernel f32 projection tile
        attn_est = (2 * H * tq * D * cb              # q blocks
                    + 4 * H * tk * D * cb            # k + v blocks
                    + 2 * H * D * E * cb + 2 * E * 4 # wo / bo
                    + 2 * tq * E * ob                # output blocks
                    + H * tq * D * 4 + 2 * H * tq * 4      # acc / m / l scratch
                    + 3 * H * tq * tk * 4 + tq * E * 4)    # s / p / y intermediates
        vmem_limit_bytes = int(min(64 * MIB, max(32 * MIB, 2 * max(proj_est, attn_est))))

    # --- pass 1: fused QKV projection, head-major outputs -----------------------------
    qkv_shape = jax.ShapeDtypeStruct((B, H, S, D), compute_dtype)
    q_hm, k_hm, v_hm = pl.pallas_call(
        functools.partial(_qkv_proj_kernel, H, scale),
        out_shape=(qkv_shape, qkv_shape, qkv_shape),
        grid_spec=pltpu.PrefetchScalarGridSpec(
            num_scalar_prefetch=0,
            grid=(B, S // ts),
            in_specs=[
                pl.BlockSpec((1, ts, E), lambda b, si: (b, si, 0)),
                pl.BlockSpec((E, 3 * E), lambda b, si: (0, 0)),
                pl.BlockSpec((1, 3 * E), lambda b, si: (0, 0)),
            ],
            out_specs=[
                pl.BlockSpec((1, H, ts, D), lambda b, si: (b, 0, si, 0)),
                pl.BlockSpec((1, H, ts, D), lambda b, si: (b, 0, si, 0)),
                pl.BlockSpec((1, H, ts, D), lambda b, si: (b, 0, si, 0)),
            ]),
        compiler_params=pltpu.CompilerParams(
            dimension_semantics=("parallel", "parallel"),
            vmem_limit_bytes=vmem_limit_bytes),
    )(x_in, wqkv, bqkv)

    # --- pass 2: flash attention + fused output projection ----------------------------
    # NOTE: the weight/bias blocks are grid-invariant and small here (wqkv no longer
    # lives in this kernel); pl.Buffered(1) on them / Buffered(3) on the K/V stream is
    # a further VMEM/latency knob left at the defaults.
    return pl.pallas_call(
        functools.partial(_flash_attention_kernel, approx_recip),
        out_shape=jax.ShapeDtypeStruct((B, S, E), x.dtype),
        grid_spec=pltpu.PrefetchScalarGridSpec(
            num_scalar_prefetch=0,
            grid=(B, nq, nk),
            in_specs=[
                pl.BlockSpec((1, H, tq, D), lambda b, qi, ki: (b, 0, qi, 0)),
                pl.BlockSpec((1, H, tk, D), lambda b, qi, ki: (b, 0, ki, 0)),
                pl.BlockSpec((1, H, tk, D), lambda b, qi, ki: (b, 0, ki, 0)),
                pl.BlockSpec((H, D, E), lambda b, qi, ki: (0, 0, 0)),
                pl.BlockSpec((1, E), lambda b, qi, ki: (0, 0)),
            ],
            out_specs=pl.BlockSpec((1, tq, E), lambda b, qi, ki: (b, qi, 0)),
            scratch_shapes=[
                pltpu.VMEM((H, tq, D), jnp.float32),   # flash output accumulator
                pltpu.VMEM((H, tq, 1), jnp.float32),   # running max
                pltpu.VMEM((H, tq, 1), jnp.float32),   # running sum
            ]),
        compiler_params=pltpu.CompilerParams(
            dimension_semantics=("parallel", "parallel", "arbitrary"),
            vmem_limit_bytes=vmem_limit_bytes),
    )(q_hm, k_hm, v_hm, wo3, bo)


def _reference(x, params, num_heads):
    B, S, E = x.shape
    D = E // num_heads
    scale = D ** (-0.5)

    def proj(w, b):
        return x @ w + b[0]

    def split(t):  # (B,S,E) -> (B*H, S, D)
        return t.reshape(B, S, num_heads, D).transpose(0, 2, 1, 3).reshape(B * num_heads, S, D)

    q = split(proj(params["wq"], params["bq"]))
    k = split(proj(params["wk"], params["bk"]))
    v = split(proj(params["wv"], params["bv"]))
    att = jax.nn.softmax(jnp.einsum('nsd,ntd->nst', q, k) * scale, axis=-1)
    out = jnp.einsum('nst,ntd->nsd', att, v)
    out = out.reshape(B, num_heads, S, D).transpose(0, 2, 1, 3).reshape(B, S, E)
    return out @ params["wo"] + params["bo"][0]


def init_params(key, embed_dim):
    # Deterministic init mimicking nn.Linear (uniform(-1/sqrt(fan_in), 1/sqrt(fan_in))).
    bound = embed_dim ** (-0.5)
    keys = jax.random.split(key, 8)

    def w(k):
        return jax.random.uniform(k, (embed_dim, embed_dim), jnp.float32, -bound, bound)

    def b(k):
        return jax.random.uniform(k, (1, embed_dim), jnp.float32, -bound, bound)

    return {
        "wq": w(keys[0]), "bq": b(keys[1]),
        "wk": w(keys[2]), "bk": b(keys[3]),
        "wv": w(keys[4]), "bv": b(keys[5]),
        "wo": w(keys[6]), "bo": b(keys[7]),
    }


if __name__ == "__main__":
    # --- primary small test, matching the module's expected shapes (strict, f32) ------
    batch, seq, embed_dim, num_heads = 2, 8, 32, 4

    key = jax.random.PRNGKey(0)
    kx, kp, kx2, kp2 = jax.random.split(key, 4)
    x = jax.random.normal(kx, (batch, seq, embed_dim), jnp.float32)
    params = init_params(kp, embed_dim)

    out = attention_forward(x, params, num_heads, compute_dtype=jnp.float32)
    out = jax.block_until_ready(out)
    ref = _reference(x, params, num_heads)
    assert out.shape == (batch, seq, embed_dim)
    assert jnp.allclose(out, ref, atol=1e-4, rtol=1e-4), "mismatch vs pure-JAX reference (f32)"

    # --- multi-tile flash path (nq=2, nk=2), strict f32 --------------------------------
    B2, S2, E2, H2 = 1, 512, 128, 4
    x2 = jax.random.normal(kx2, (B2, S2, E2), jnp.float32)
    params2 = init_params(kp2, E2)
    out2 = attention_forward(x2, params2, H2, q_tile=256, kv_tile=256,
                             compute_dtype=jnp.float32)
    out2 = jax.block_until_ready(out2)
    ref2 = _reference(x2, params2, H2)
    assert jnp.allclose(out2, ref2, atol=1e-4, rtol=1e-4), "mismatch (tiled path, f32)"

    # --- default bf16 MXU path (v5e/v6e/v7x throughput mode), loose tolerance ----------
    out3 = attention_forward(x2, params2, H2, q_tile=256, kv_tile=256)
    out3 = jax.block_until_ready(out3)
    max_err = float(jnp.max(jnp.abs(out3.astype(jnp.float32) - ref2)))
    assert max_err < 1e-1, f"bf16 path error too large: {max_err}"

    print("KERNEL_OK")
</pallas_src>

<mosaic_0001>
module attributes {stable_mosaic.version = 11 : i64} {
  func.func @_qkv_proj_kernel(%arg0: i32, %arg1: i32, %arg2: memref<1x8x32xf32, #tpu.memory_space<vmem>>, %arg3: memref<32x96xf32, #tpu.memory_space<vmem>>, %arg4: memref<1x96xf32, #tpu.memory_space<vmem>>, %arg5: memref<1x4x8x8xf32, #tpu.memory_space<vmem>>, %arg6: memref<1x4x8x8xf32, #tpu.memory_space<vmem>>, %arg7: memref<1x4x8x8xf32, #tpu.memory_space<vmem>>) attributes {dimension_semantics = [#tpu.dimension_semantics<parallel>, #tpu.dimension_semantics<parallel>], iteration_bounds = array<i64: 2, 1>, scalar_prefetch = 0 : i64, scratch_operands = 0 : i64, tpu.core_type = #tpu.core_type<tc>, window_params = [{transform_indices = @transform_0, window_bounds = array<i64: 1, 8, 32>}, {pipeline_mode = #tpu.pipeline_mode<synchronous>, transform_indices = @transform_1, window_bounds = array<i64: 32, 96>}, {pipeline_mode = #tpu.pipeline_mode<synchronous>, transform_indices = @transform_2, window_bounds = array<i64: 1, 96>}, {transform_indices = @transform_3, window_bounds = array<i64: 1, 4, 8, 8>}, {transform_indices = @transform_4, window_bounds = array<i64: 1, 4, 8, 8>}, {transform_indices = @transform_5, window_bounds = array<i64: 1, 4, 8, 8>}]} {
    %c0 = arith.constant 0 : index
    %c0_0 = arith.constant 0 : index
    %c0_1 = arith.constant 0 : index
    %0 = vector.load %arg2[%c0, %c0_0, %c0_1] : memref<1x8x32xf32, #tpu.memory_space<vmem>>, vector<1x8x32xf32>
    %1 = vector.shape_cast %0 : vector<1x8x32xf32> to vector<8x32xf32>
    %c0_2 = arith.constant 0 : index
    %c0_3 = arith.constant 0 : index
    %2 = vector.load %arg3[%c0_2, %c0_3] : memref<32x96xf32, #tpu.memory_space<vmem>>, vector<32x96xf32>
    %cst = arith.constant dense<0.000000e+00> : vector<8x96xf32>
    %3 = tpu.matmul %1, %2, %cst {dimension_numbers = #tpu.dot_dimension_numbers<[1], [0], [0], [1], [0, 0, 1, 1], [], []>} : vector<8x32xf32>, vector<32x96xf32>, vector<8x96xf32> -> vector<8x96xf32>
    %c0_4 = arith.constant 0 : index
    %c0_5 = arith.constant 0 : index
    %4 = vector.load %arg4[%c0_4, %c0_5] : memref<1x96xf32, #tpu.memory_space<vmem>>, vector<1x96xf32>
    %5 = vector.shape_cast %4 : vector<1x96xf32> to vector<96xf32>
    %6 = vector.shape_cast %5 : vector<96xf32> to vector<1x96xf32>
    %7 = vector.broadcast %6 : vector<1x96xf32> to vector<8x96xf32>
    %8 = arith.addf %3, %7 : vector<8x96xf32>
    %9 = vector.extract_strided_slice %8 {offsets = [0, 0], sizes = [8, 8], strides = [1, 1]} : vector<8x96xf32> to vector<8x8xf32>
    %cst_6 = arith.constant 0.353553385 : f32
    %10 = vector.broadcast %cst_6 : f32 to vector<8x8xf32>
    %11 = arith.mulf %9, %10 : vector<8x8xf32>
    %c0_7 = arith.constant 0 : index
    %c0_8 = arith.constant 0 : index
    %c0_9 = arith.constant 0 : index
    %c0_10 = arith.constant 0 : index
    %12 = vector.load %arg5[%c0_7, %c0_8, %c0_9, %c0_10] : memref<1x4x8x8xf32, #tpu.memory_space<vmem>>, vector<1x1x8x8xf32>
    %13 = vector.shape_cast %12 : vector<1x1x8x8xf32> to vector<8x8xf32>
    %14 = vector.shape_cast %11 : vector<8x8xf32> to vector<1x1x8x8xf32>
    tpu.vector_store %arg5[%c0_7, %c0_8, %c0_9, %c0_10], %14 {strides = array<i32>} : memref<1x4x8x8xf32, #tpu.memory_space<vmem>>, vector<1x1x8x8xf32>,
    %15 = vector.extract_strided_slice %8 {offsets = [0, 32], sizes = [8, 8], strides = [1, 1]} : vector<8x96xf32> to vector<8x8xf32>
    %c0_11 = arith.constant 0 : index
    %c0_12 = arith.constant 0 : index
    %c0_13 = arith.constant 0 : index
    %c0_14 = arith.constant 0 : index
    %16 = vector.load %arg6[%c0_11, %c0_12, %c0_13, %c0_14] : memref<1x4x8x8xf32, #tpu.memory_space<vmem>>, vector<1x1x8x8xf32>
    %17 = vector.shape_cast %16 : vector<1x1x8x8xf32> to vector<8x8xf32>
    %18 = vector.shape_cast %15 : vector<8x8xf32> to vector<1x1x8x8xf32>
    tpu.vector_store %arg6[%c0_11, %c0_12, %c0_13, %c0_14], %18 {strides = array<i32>} : memref<1x4x8x8xf32, #tpu.memory_space<vmem>>, vector<1x1x8x8xf32>,
    %19 = vector.extract_strided_slice %8 {offsets = [0, 64], sizes = [8, 8], strides = [1, 1]} : vector<8x96xf32> to vector<8x8xf32>
    %c0_15 = arith.constant 0 : index
    %c0_16 = arith.constant 0 : index
    %c0_17 = arith.constant 0 : index
    %c0_18 = arith.constant 0 : index
    %20 = vector.load %arg7[%c0_15, %c0_16, %c0_17, %c0_18] : memref<1x4x8x8xf32, #tpu.memory_space<vmem>>, vector<1x1x8x8xf32>
    %21 = vector.shape_cast %20 : vector<1x1x8x8xf32> to vector<8x8xf32>
    %22 = vector.shape_cast %19 : vector<8x8xf32> to vector<1x1x8x8xf32>
    tpu.vector_store %arg7[%c0_15, %c0_16, %c0_17, %c0_18], %22 {strides = array<i32>} : memref<1x4x8x8xf32, #tpu.memory_space<vmem>>, vector<1x1x8x8xf32>,
    %23 = vector.extract_strided_slice %8 {offsets = [0, 8], sizes = [8, 8], strides = [1, 1]} : vector<8x96xf32> to vector<8x8xf32>
    %cst_19 = arith.constant 0.353553385 : f32
    %24 = vector.broadcast %cst_19 : f32 to vector<8x8xf32>
    %25 = arith.mulf %23, %24 : vector<8x8xf32>
    %c0_20 = arith.constant 0 : index
    %c1 = arith.constant 1 : index
    %c0_21 = arith.constant 0 : index
    %c0_22 = arith.constant 0 : index
    %26 = vector.load %arg5[%c0_20, %c1, %c0_21, %c0_22] : memref<1x4x8x8xf32, #tpu.memory_space<vmem>>, vector<1x1x8x8xf32>
    %27 = vector.shape_cast %26 : vector<1x1x8x8xf32> to vector<8x8xf32>
    %28 = vector.shape_cast %25 : vector<8x8xf32> to vector<1x1x8x8xf32>
    tpu.vector_store %arg5[%c0_20, %c1, %c0_21, %c0_22], %28 {strides = array<i32>} : memref<1x4x8x8xf32, #tpu.memory_space<vmem>>, vector<1x1x8x8xf32>,
    %29 = vector.extract_strided_slice %8 {offsets = [0, 40], sizes = [8, 8], strides = [1, 1]} : vector<8x96xf32> to vector<8x8xf32>
    %c0_23 = arith.constant 0 : index
    %c1_24 = arith.constant 1 : index
    %c0_25 = arith.constant 0 : index
    %c0_26 = arith.constant 0 : index
    %30 = vector.load %arg6[%c0_23, %c1_24, %c0_25, %c0_26] : memref<1x4x8x8xf32, #tpu.memory_space<vmem>>, vector<1x1x8x8xf32>
    %31 = vector.shape_cast %30 : vector<1x1x8x8xf32> to vector<8x8xf32>
    %32 = vector.shape_cast %29 : vector<8x8xf32> to vector<1x1x8x8xf32>
    tpu.vector_store %arg6[%c0_23, %c1_24, %c0_25, %c0_26], %32 {strides = array<i32>} : memref<1x4x8x8xf32, #tpu.memory_space<vmem>>, vector<1x1x8x8xf32>,
    %33 = vector.extract_strided_slice %8 {offsets = [0, 72], sizes = [8, 8], strides = [1, 1]} : vector<8x96xf32> to vector<8x8xf32>
    %c0_27 = arith.constant 0 : index
    %c1_28 = arith.constant 1 : index
    %c0_29 = arith.constant 0 : index
    %c0_30 = arith.constant 0 : index
    %34 = vector.load %arg7[%c0_27, %c1_28, %c0_29, %c0_30] : memref<1x4x8x8xf32, #tpu.memory_space<vmem>>, vector<1x1x8x8xf32>
    %35 = vector.shape_cast %34 : vector<1x1x8x8xf32> to vector<8x8xf32>
    %36 = vector.shape_cast %33 : vector<8x8xf32> to vector<1x1x8x8xf32>
    tpu.vector_store %arg7[%c0_27, %c1_28, %c0_29, %c0_30], %36 {strides = array<i32>} : memref<1x4x8x8xf32, #tpu.memory_space<vmem>>, vector<1x1x8x8xf32>,
    %37 = vector.extract_strided_slice %8 {offsets = [0, 16], sizes = [8, 8], strides = [1, 1]} : vector<8x96xf32> to vector<8x8xf32>
    %cst_31 = arith.constant 0.353553385 : f32
    %38 = vector.broadcast %cst_31 : f32 to vector<8x8xf32>
    %39 = arith.mulf %37, %38 : vector<8x8xf32>
    %c0_32 = arith.constant 0 : index
    %c2 = arith.constant 2 : index
    %c0_33 = arith.constant 0 : index
    %c0_34 = arith.constant 0 : index
    %40 = vector.load %arg5[%c0_32, %c2, %c0_33, %c0_34] : memref<1x4x8x8xf32, #tpu.memory_space<vmem>>, vector<1x1x8x8xf32>
    %41 = vector.shape_cast %40 : vector<1x1x8x8xf32> to vector<8x8xf32>
    %42 = vector.shape_cast %39 : vector<8x8xf32> to vector<1x1x8x8xf32>
    tpu.vector_store %arg5[%c0_32, %c2, %c0_33, %c0_34], %42 {strides = array<i32>} : memref<1x4x8x8xf32, #tpu.memory_space<vmem>>, vector<1x1x8x8xf32>,
    %43 = vector.extract_strided_slice %8 {offsets = [0, 48], sizes = [8, 8], strides = [1, 1]} : vector<8x96xf32> to vector<8x8xf32>
    %c0_35 = arith.constant 0 : index
    %c2_36 = arith.constant 2 : index
    %c0_37 = arith.constant 0 : index
    %c0_38 = arith.constant 0 : index
    %44 = vector.load %arg6[%c0_35, %c2_36, %c0_37, %c0_38] : memref<1x4x8x8xf32, #tpu.memory_space<vmem>>, vector<1x1x8x8xf32>
    %45 = vector.shape_cast %44 : vector<1x1x8x8xf32> to vector<8x8xf32>
    %46 = vector.shape_cast %43 : vector<8x8xf32> to vector<1x1x8x8xf32>
    tpu.vector_store %arg6[%c0_35, %c2_36, %c0_37, %c0_38], %46 {strides = array<i32>} : memref<1x4x8x8xf32, #tpu.memory_space<vmem>>, vector<1x1x8x8xf32>,
    %47 = vector.extract_strided_slice %8 {offsets = [0, 80], sizes = [8, 8], strides = [1, 1]} : vector<8x96xf32> to vector<8x8xf32>
    %c0_39 = arith.constant 0 : index
    %c2_40 = arith.constant 2 : index
    %c0_41 = arith.constant 0 : index
    %c0_42 = arith.constant 0 : index
    %48 = vector.load %arg7[%c0_39, %c2_40, %c0_41, %c0_42] : memref<1x4x8x8xf32, #tpu.memory_space<vmem>>, vector<1x1x8x8xf32>
    %49 = vector.shape_cast %48 : vector<1x1x8x8xf32> to vector<8x8xf32>
    %50 = vector.shape_cast %47 : vector<8x8xf32> to vector<1x1x8x8xf32>
    tpu.vector_store %arg7[%c0_39, %c2_40, %c0_41, %c0_42], %50 {strides = array<i32>} : memref<1x4x8x8xf32, #tpu.memory_space<vmem>>, vector<1x1x8x8xf32>,
    %51 = vector.extract_strided_slice %8 {offsets = [0, 24], sizes = [8, 8], strides = [1, 1]} : vector<8x96xf32> to vector<8x8xf32>
    %cst_43 = arith.constant 0.353553385 : f32
    %52 = vector.broadcast %cst_43 : f32 to vector<8x8xf32>
    %53 = arith.mulf %51, %52 : vector<8x8xf32>
    %c0_44 = arith.constant 0 : index
    %c3 = arith.constant 3 : index
    %c0_45 = arith.constant 0 : index
    %c0_46 = arith.constant 0 : index
    %54 = vector.load %arg5[%c0_44, %c3, %c0_45, %c0_46] : memref<1x4x8x8xf32, #tpu.memory_space<vmem>>, vector<1x1x8x8xf32>
    %55 = vector.shape_cast %54 : vector<1x1x8x8xf32> to vector<8x8xf32>
    %56 = vector.shape_cast %53 : vector<8x8xf32> to vector<1x1x8x8xf32>
    tpu.vector_store %arg5[%c0_44, %c3, %c0_45, %c0_46], %56 {strides = array<i32>} : memref<1x4x8x8xf32, #tpu.memory_space<vmem>>, vector<1x1x8x8xf32>,
    %57 = vector.extract_strided_slice %8 {offsets = [0, 56], sizes = [8, 8], strides = [1, 1]} : vector<8x96xf32> to vector<8x8xf32>
    %c0_47 = arith.constant 0 : index
    %c3_48 = arith.constant 3 : index
    %c0_49 = arith.constant 0 : index
    %c0_50 = arith.constant 0 : index
    %58 = vector.load %arg6[%c0_47, %c3_48, %c0_49, %c0_50] : memref<1x4x8x8xf32, #tpu.memory_space<vmem>>, vector<1x1x8x8xf32>
    %59 = vector.shape_cast %58 : vector<1x1x8x8xf32> to vector<8x8xf32>
    %60 = vector.shape_cast %57 : vector<8x8xf32> to vector<1x1x8x8xf32>
    tpu.vector_store %arg6[%c0_47, %c3_48, %c0_49, %c0_50], %60 {strides = array<i32>} : memref<1x4x8x8xf32, #tpu.memory_space<vmem>>, vector<1x1x8x8xf32>,
    %61 = vector.extract_strided_slice %8 {offsets = [0, 88], sizes = [8, 8], strides = [1, 1]} : vector<8x96xf32> to vector<8x8xf32>
    %c0_51 = arith.constant 0 : index
    %c3_52 = arith.constant 3 : index
    %c0_53 = arith.constant 0 : index
    %c0_54 = arith.constant 0 : index
    %62 = vector.load %arg7[%c0_51, %c3_52, %c0_53, %c0_54] : memref<1x4x8x8xf32, #tpu.memory_space<vmem>>, vector<1x1x8x8xf32>
    %63 = vector.shape_cast %62 : vector<1x1x8x8xf32> to vector<8x8xf32>
    %64 = vector.shape_cast %61 : vector<8x8xf32> to vector<1x1x8x8xf32>
    tpu.vector_store %arg7[%c0_51, %c3_52, %c0_53, %c0_54], %64 {strides = array<i32>} : memref<1x4x8x8xf32, #tpu.memory_space<vmem>>, vector<1x1x8x8xf32>,
    return
  }
  func.func @transform_0(%arg0: i32, %arg1: i32) -> (i32, i32, i32) {
    %c0_i32 = arith.constant 0 : i32
    %c0_i32_0 = arith.constant 0 : i32
    return %arg0, %arg1, %c0_i32 : i32, i32, i32
  }
  func.func @transform_1(%arg0: i32, %arg1: i32) -> (i32, i32) {
    %c0_i32 = arith.constant 0 : i32
    %c0_i32_0 = arith.constant 0 : i32
    %c0_i32_1 = arith.constant 0 : i32
    return %c0_i32, %c0_i32_0 : i32, i32
  }
  func.func @transform_2(%arg0: i32, %arg1: i32) -> (i32, i32) {
    %c0_i32 = arith.constant 0 : i32
    %c0_i32_0 = arith.constant 0 : i32
    %c0_i32_1 = arith.constant 0 : i32
    return %c0_i32, %c0_i32_0 : i32, i32
  }
  func.func @transform_3(%arg0: i32, %arg1: i32) -> (i32, i32, i32, i32) {
    %c0_i32 = arith.constant 0 : i32
    %c0_i32_0 = arith.constant 0 : i32
    %c0_i32_1 = arith.constant 0 : i32
    return %arg0, %c0_i32, %arg1, %c0_i32_0 : i32, i32, i32, i32
  }
  func.func @transform_4(%arg0: i32, %arg1: i32) -> (i32, i32, i32, i32) {
    %c0_i32 = arith.constant 0 : i32
    %c0_i32_0 = arith.constant 0 : i32
    %c0_i32_1 = arith.constant 0 : i32
    return %arg0, %c0_i32, %arg1, %c0_i32_0 : i32, i32, i32, i32
  }
  func.func @transform_5(%arg0: i32, %arg1: i32) -> (i32, i32, i32, i32) {
    %c0_i32 = arith.constant 0 : i32
    %c0_i32_0 = arith.constant 0 : i32
    %c0_i32_1 = arith.constant 0 : i32
    return %arg0, %c0_i32, %arg1, %c0_i32_0 : i32, i32, i32, i32
  }
}

</mosaic_0001>

<llo_original>
// kernel: tpu_custom_call.1
$region0: #{tpu_custom_call.1}
  #allocation0 [shape = 'u32[]', space=smem, size = 0x4, offset = 0x4, fixed_abs, tag = 'smem constant byte address 0x4 - core index']
  #allocation1 [shape = 'u32[144,128]{1,0:T(1,128)}', space=vmem, size = 0x12000, scoped, tag = 'internal scratch']
  %s0 = inlined_call_operand.hbm [shape: f32[2,8,32], index: 0, kind: input, shape index: {}]
  %s1 = inlined_call_operand.hbm [shape: f32[32,96], index: 1, kind: input, shape index: {}]
  %s2 = inlined_call_operand.vmem [shape: f32[1,96], index: 2, kind: input, shape index: {}]
  %s3 = inlined_call_operand.hbm [shape: f32[2,4,8,8], index: 3, kind: output, shape index: {0}]
  %s4 = inlined_call_operand.hbm [shape: f32[2,4,8,8], index: 4, kind: output, shape index: {1}]
  %s5 = inlined_call_operand.hbm [shape: f32[2,4,8,8], index: 5, kind: output, shape index: {2}]
  %6 = xla_tuple %s3, %s4, %s5
  %s7 = sld [smem:[#allocation0]]
  $region69: #{tpu_custom_call.1} parent=0
    _
  %s9 = ssub.s32 1, %s7
  %s10 = scalar_select 0, %s9, %s7
  $region1: #{tpu_custom_call.1} parent=0
    #allocation2 [shape = 'u8[8192]{0}', space=vmem, size = 0x2000, scoped, tag = 'input window, operand 0']
    #allocation3 [shape = 's32[2]{0}', space=sflag, size = 0x8, scoped, tag = 'scoped memory for tpu_custom_call.1']
    #allocation4 [shape = 's32[2]{0}', space=sflag, size = 0x8, scoped, tag = 'scoped memory for tpu_custom_call.1']
    #allocation5 [shape = 'u8[16384]{0}', space=vmem, size = 0x4000, scoped, tag = 'input window, operand 1, single buffered']
    #allocation6 [shape = 's32[1]{0}', space=sflag, size = 0x4, scoped, tag = 'scoped memory for tpu_custom_call.1']
    #allocation7 [shape = 'u8[32768]{0}', space=vmem, size = 0x8000, scoped, tag = 'output window, operand 0']
    #allocation8 [shape = 'u8[32768]{0}', space=vmem, size = 0x8000, scoped, tag = 'output window, operand 1']
    #allocation9 [shape = 's32[2]{0}', space=sflag, size = 0x8, scoped, tag = 'scoped memory for tpu_custom_call.1']
    #allocation10 [shape = 'u8[32768]{0}', space=vmem, size = 0x8000, scoped, tag = 'output window, operand 2']
    %11 = vsyncpa [#allocation3], 0
    %s12 = scalar_lea.sflag [#allocation3], 1
    %13 = vsyncpa %s12, 0
    %14 = vsyncpa [#allocation6], 0
    %15 = vsyncpa [#allocation4], 0
    %s16 = scalar_lea.sflag [#allocation4], 1
    %17 = vsyncpa %s16, 0
    %18 = vsyncpa [#allocation9], 0
    %s19 = scalar_lea.sflag [#allocation9], 1
    %20 = vsyncpa %s19, 0
    loop: start=0, step=1, limit=4
    $region2: #{tpu_custom_call.1} parent=1 // loop_pre_header
      _
    $region3: #{tpu_custom_call.1} parent=1 // loop_header
      %s22 = sphi 0, %s26
      %p23 = scmp.ge.s32.totalorder %s22, 4
      %s29 = sphi 0, %s41
      %s30 = sphi 0, %s37
      %s31 = sphi 0, %s29
      %s32 = sphi 0, %s30
      %s33 = sphi 0, %s31
      %s34 = sphi 0, %s32
      %s46 = sphi 0, %s48
      %s49 = sphi 0, %s46
      %s50 = sphi 0, %s49
      %s66 = sphi 0, %s50
      %s70 = sphi 0, %s70
      %s72 = sphi 0, %s70
      %s73 = sphi 0, %s72
      %s87 = sphi 0, %s73
      %s91 = sphi 0, %s91
      %s93 = sphi 0, %s91
      %s94 = sphi 0, %s93
      %s108 = sphi 0, %s94
      %s116 = sphi 0, %s118
      %s119 = sphi 0, %s116
      %s120 = sphi 0, %s119
      %s136 = sphi 0, %s120
      %s144 = sphi 0, %s146
      %s147 = sphi 0, %s144
      %s148 = sphi 0, %s147
      %s164 = sphi 0, %s148
      %s172 = sphi 0, %s174
      %s175 = sphi 0, %s172
      %s176 = sphi 0, %s175
      %s192 = sphi 0, %s176
    $region4: #{tpu_custom_call.1} parent=1 // loop_header_branch
      %25 = sbr.rel (%p23) target = $region8
    $region5: #{tpu_custom_call.1} parent=1 // loop_body
      %s27 = ssub.s32 %s22, 1
      %s28 = ssub.s32 %s22, 2
      %s35 = sadd.s32 1, %s30
      %p36 = scmp.ge.s32.totalorder %s35, 1
      %s37 = scalar_select %p36, 0, %s35
      %s38 = sadd.s32 1, %s29
      %s39 = scalar_select %p36, %s38, %s29
      %p40 = scmp.ge.s32.totalorder %s39, 2
      %s41 = scalar_select %p40, 0, %s39
      %s42 = ssub.s32 %s29, %s41
      %s43 = ssub.s32 %s30, %s37
      %s44 = sor.u32 %s42, %s43
      %p45 = scmp.eq.s32.totalorder %s44, 0
      %s47 = sadd.s32 %s46, 1
      %s48 = scalar_select %p45, %s46, %s47
      %p51 = pneg %p45
      %p52 = scmp.eq.s32.totalorder %s22, 1
      %p53 = por %p51, %p52
      %p54 = scmp.ne.s32.totalorder %s46, %s49
      %p55 = scmp.eq.s32.totalorder %s22, 0
      %p56 = por %p54, %p55
      %p57 = scmp.ne.s32.totalorder %s46, %s49
      %p58 = scmp.eq.s32.totalorder %s27, 1
      %p59 = por %p57, %p58
      %p60 = scmp.ne.s32.totalorder %s49, %s50
      %p61 = scmp.eq.s32.totalorder %s27, 0
      %p62 = por %p60, %p61
      %p63 = scmp.ne.s32.totalorder %s49, %s50
      %p64 = scmp.eq.s32.totalorder %s28, 1
      %p65 = por %p63, %p64
      %p67 = scmp.ne.s32.totalorder %s50, %s66
      %p68 = scmp.eq.s32.totalorder %s28, 0
      %p69 = por %p67, %p68
      %s71 = sadd.s32 %s70, 1
      %p74 = scmp.eq.s32.totalorder %s22, 1
      %p75 = scmp.ne.s32.totalorder %s70, %s72
      %p76 = scmp.eq.s32.totalorder %s22, 0
      %p77 = por %p75, %p76
      %p78 = scmp.ne.s32.totalorder %s70, %s72
      %p79 = scmp.eq.s32.totalorder %s27, 1
      %p80 = por %p78, %p79
      %p81 = scmp.ne.s32.totalorder %s72, %s73
      %p82 = scmp.eq.s32.totalorder %s27, 0
      %p83 = por %p81, %p82
      %p84 = scmp.ne.s32.totalorder %s72, %s73
      %p85 = scmp.eq.s32.totalorder %s28, 1
      %p86 = por %p84, %p85
      %p88 = scmp.ne.s32.totalorder %s73, %s87
      %p89 = scmp.eq.s32.totalorder %s28, 0
      %p90 = por %p88, %p89
      %s92 = sadd.s32 %s91, 1
      %p95 = scmp.eq.s32.totalorder %s22, 1
      %p96 = scmp.ne.s32.totalorder %s91, %s93
      %p97 = scmp.eq.s32.totalorder %s22, 0
      %p98 = por %p96, %p97
      %p99 = scmp.ne.s32.totalorder %s91, %s93
      %p100 = scmp.eq.s32.totalorder %s27, 1
      %p101 = por %p99, %p100
      %p102 = scmp.ne.s32.totalorder %s93, %s94
      %p103 = scmp.eq.s32.totalorder %s27, 0
      %p104 = por %p102, %p103
      %p105 = scmp.ne.s32.totalorder %s93, %s94
      %p106 = scmp.eq.s32.totalorder %s28, 1
      %p107 = por %p105, %p106
      %p109 = scmp.ne.s32.totalorder %s94, %s108
      %p110 = scmp.eq.s32.totalorder %s28, 0
      %p111 = por %p109, %p110
      %s112 = ssub.s32 %s29, %s41
      %s113 = ssub.s32 %s30, %s37
      %s114 = sor.u32 %s112, %s113
      %p115 = scmp.eq.s32.totalorder %s114, 0
      %s117 = sadd.s32 %s116, 1
      %s118 = scalar_select %p115, %s116, %s117
      %p121 = pneg %p115
      %p122 = scmp.eq.s32.totalorder %s22, 1
      %p123 = por %p121, %p122
      %p124 = scmp.ne.s32.totalorder %s116, %s119
      %p125 = scmp.eq.s32.totalorder %s22, 0
      %p126 = por %p124, %p125
      %p127 = scmp.ne.s32.totalorder %s116, %s119
      %p128 = scmp.eq.s32.totalorder %s27, 1
      %p129 = por %p127, %p128
      %p130 = scmp.ne.s32.totalorder %s119, %s120
      %p131 = scmp.eq.s32.totalorder %s27, 0
      %p132 = por %p130, %p131
      %p133 = scmp.ne.s32.totalorder %s119, %s120
      %p134 = scmp.eq.s32.totalorder %s28, 1
      %p135 = por %p133, %p134
      %p137 = scmp.ne.s32.totalorder %s120, %s136
      %p138 = scmp.eq.s32.totalorder %s28, 0
      %p139 = por %p137, %p138
      %s140 = ssub.s32 %s29, %s41
      %s141 = ssub.s32 %s30, %s37
      %s142 = sor.u32 %s140, %s141
      %p143 = scmp.eq.s32.totalorder %s142, 0
      %s145 = sadd.s32 %s144, 1
      %s146 = scalar_select %p143, %s144, %s145
      %p149 = pneg %p143
      %p150 = scmp.eq.s32.totalorder %s22, 1
      %p151 = por %p149, %p150
      %p152 = scmp.ne.s32.totalorder %s144, %s147
      %p153 = scmp.eq.s32.totalorder %s22, 0
      %p154 = por %p152, %p153
      %p155 = scmp.ne.s32.totalorder %s144, %s147
      %p156 = scmp.eq.s32.totalorder %s27, 1
      %p157 = por %p155, %p156
      %p158 = scmp.ne.s32.totalorder %s147, %s148
      %p159 = scmp.eq.s32.totalorder %s27, 0
      %p160 = por %p158, %p159
      %p161 = scmp.ne.s32.totalorder %s147, %s148
      %p162 = scmp.eq.s32.totalorder %s28, 1
      %p163 = por %p161, %p162
      %p165 = scmp.ne.s32.totalorder %s148, %s164
      %p166 = scmp.eq.s32.totalorder %s28, 0
      %p167 = por %p165, %p166
      %s168 = ssub.s32 %s29, %s41
      %s169 = ssub.s32 %s30, %s37
      %s170 = sor.u32 %s168, %s169
      %p171 = scmp.eq.s32.totalorder %s170, 0
      %s173 = sadd.s32 %s172, 1
      %s174 = scalar_select %p171, %s172, %s173
      %p177 = pneg %p171
      %p178 = scmp.eq.s32.totalorder %s22, 1
      %p179 = por %p177, %p178
      %p180 = scmp.ne.s32.totalorder %s172, %s175
      %p181 = scmp.eq.s32.totalorder %s22, 0
      %p182 = por %p180, %p181
      %p183 = scmp.ne.s32.totalorder %s172, %s175
      %p184 = scmp.eq.s32.totalorder %s27, 1
      %p185 = por %p183, %p184
      %p186 = scmp.ne.s32.totalorder %s175, %s176
      %p187 = scmp.eq.s32.totalorder %s27, 0
      %p188 = por %p186, %p187
      %p189 = scmp.ne.s32.totalorder %s175, %s176
      %p190 = scmp.eq.s32.totalorder %s28, 1
      %p191 = por %p189, %p190
      %p193 = scmp.ne.s32.totalorder %s176, %s192
      %p194 = scmp.eq.s32.totalorder %s28, 0
      %p195 = por %p193, %p194
      %p196 = scmp.le.s32.totalorder 1, %s22
      %p197 = scmp.lt.s32.totalorder %s22, 3
      %p198 = pnand %p196, %p197
      %p199 = pneg %p198
      // Predicated region
      $region9: #{tpu_custom_call.1} parent=5 // pred_check
        _
      $region10: #{tpu_custom_call.1} parent=5 // pred_check_branch
        %201 = sbr.rel (%p198) target = $region12
      $region11: #{tpu_custom_call.1} parent=5 // pred_region
        %s202 = ssub.s32 %s22, 1
        // Predicated region
        $region13: #{tpu_custom_call.1} parent=11 // pred_check
          %p203 = pneg %p83
        $region14: #{tpu_custom_call.1} parent=11 // pred_check_branch
          %205 = sbr.rel (%p203) target = $region16
        $region15: #{tpu_custom_call.1} parent=11 // pred_region
          %s207 = ssub.s32 512, 512
          %208 = vsyncadd [#allocation6], %s207
          %s209 = sshll.u32 [#allocation5], 4
          %s210 = int_to_ptr.vmem [resolvable:$true] %s209
          %215 = dma.hbm_to_vmem [thread:$0]  %s1, 512, %s210, [#allocation6], 128, 128, 8
        $region16: #{tpu_custom_call.1} parent=11 // pred_fallthru
          _
        // Predicated region
        $region17: #{tpu_custom_call.1} parent=11 // pred_check
          %p216 = pneg %p104
        $region18: #{tpu_custom_call.1} parent=11 // pred_check_branch
          %218 = sbr.rel (%p216) target = $region20
        $region19: #{tpu_custom_call.1} parent=11 // pred_region
          _
        $region20: #{tpu_custom_call.1} parent=11 // pred_fallthru
          _
      $region12: #{tpu_custom_call.1} parent=5 // pred_fallthru
        _
      %p219 = scmp.lt.s32.totalorder %s22, 2
      // Predicated region
      $region21: #{tpu_custom_call.1} parent=5 // pred_check
        %p220 = pneg %p219
      $region22: #{tpu_custom_call.1} parent=5 // pred_check_branch
        %222 = sbr.rel (%p220) target = $region24
      $region23: #{tpu_custom_call.1} parent=5 // pred_region
        // Predicated region
        $region25: #{tpu_custom_call.1} parent=23 // pred_check
          %p223 = pneg %p56
        $region26: #{tpu_custom_call.1} parent=23 // pred_check_branch
          %225 = sbr.rel (%p223) target = $region28
        $region27: #{tpu_custom_call.1} parent=23 // pred_region
          %s226 = sand.u32 %s46, 1
          %s227 = scalar_lea.sflag [#allocation3], %s226
          %s228 = sand.u32 %s46, 1
          %s229 = smul.addr %s228, 8
          %s230 = scalar_lea.vmem [#allocation2], %s229
          %s232 = ssub.s32 128, 128
          %233 = vsyncadd %s227, %s232
          %s234 = sadd.s32 %s30, %s29
          %s235 = smul.addr %s234, 128
          %s236 = scalar_lea.hbm %s0, %s235
          %s238 = sshll.u32 %s230, 4
          %s239 = int_to_ptr.vmem [resolvable:$true] %s238
          %241 = dma.hbm_to_vmem [thread:$0]  %s236, 128, %s239, %s227
        $region28: #{tpu_custom_call.1} parent=23 // pred_fallthru
          _
      $region24: #{tpu_custom_call.1} parent=5 // pred_fallthru
        _
      %p242 = scmp.le.s32.totalorder 1, %s22
      %p243 = scmp.lt.s32.totalorder %s22, 3
      %p244 = pnand %p242, %p243
      %p245 = pneg %p244
      // Predicated region
      $region29: #{tpu_custom_call.1} parent=5 // pred_check
        _
      $region30: #{tpu_custom_call.1} parent=5 // pred_check_branch
        %247 = sbr.rel (%p244) target = $region32
      $region31: #{tpu_custom_call.1} parent=5 // pred_region
        %s248 = ssub.s32 %s22, 1
        %s249 = sand.u32 %s49, 1
        %s250 = scalar_lea.sflag [#allocation3], %s249
        %s251 = sand.u32 %s49, 1
        %s252 = smul.addr %s251, 8
        %s253 = scalar_lea.vmem [#allocation2], %s252
        // Predicated region
        $region33: #{tpu_custom_call.1} parent=31 // pred_check
          %p254 = pneg %p62
        $region34: #{tpu_custom_call.1} parent=31 // pred_check_branch
          %256 = sbr.rel (%p254) target = $region36
        $region35: #{tpu_custom_call.1} parent=31 // pred_region
          %257 = dma.done %s250, 128
        $region36: #{tpu_custom_call.1} parent=31 // pred_fallthru
          _
        // Predicated region
        $region37: #{tpu_custom_call.1} parent=31 // pred_check
          %p258 = pneg %p83
        $region38: #{tpu_custom_call.1} parent=31 // pred_check_branch
          %260 = sbr.rel (%p258) target = $region40
        $region39: #{tpu_custom_call.1} parent=31 // pred_region
          %261 = dma.done [#allocation6], 512
        $region40: #{tpu_custom_call.1} parent=31 // pred_fallthru
          _
        %s262 = sand.u32 %s49, 1
        %s263 = scalar_lea.sflag [#allocation3], %s262
        %s264 = sand.u32 %s49, 1
        %s265 = smul.addr %s264, 8
        %s266 = scalar_lea.vmem [#allocation2], %s265
        %p267 = pneg %p62
        %p268 = pneg %p59
        %p269 = pneg %p83
        %p270 = pneg %p80
        %p271 = pneg %p104
        %p272 = pneg %p101
        %p273 = pneg %p132
        %p274 = pneg %p129
        %s275 = sand.u32 %s119, 1
        %s276 = scalar_lea.sflag [#allocation4], %s275
        %s277 = sand.u32 %s119, 1
        %s278 = smul.addr %s277, 32
        %s279 = scalar_lea.vmem [#allocation7], %s278
        %p280 = pneg %p160
        %p281 = pneg %p157
        %s282 = sand.u32 %s27, 1
        %s283 = scalar_lea.sflag [#allocation9], %s282
        %s284 = sand.u32 %s147, 1
        %s285 = smul.addr %s284, 32
        %s286 = scalar_lea.vmem [#allocation8], %s285
        %p287 = pneg %p188
        %p288 = pneg %p185
        %s289 = sand.u32 %s27, 1
        %s290 = scalar_lea.sflag [#allocation9], %s289
        %s291 = sand.u32 %s175, 1
        %s292 = smul.addr %s291, 32
        %s293 = scalar_lea.vmem [#allocation10], %s292
        %v294 = vld [vmem:[%s253] sm:$0xff]
        %v295 = vld [vmem:[#allocation5] sm:$0xff]
        %v296 = vld [vmem:[#allocation5 + $0x8] sm:$0xff]
        %v297 = vld [vmem:[#allocation5 + $0x10] sm:$0xff]
        %v298 = vld [vmem:[#allocation5 + $0x18] sm:$0xff]
        %v299 = vld [vmem:[%s2] sm:$0x1]
        %v301 = vlaneseq
        %v302 = vshrl.u32 %v301, 7
        %v303 = vsub.s32 0, %v302
        %v304 = vrot.slane %v299, %v303
        %vm306 = vcmask 261120
        %v308 = vsel %vm306, %v294, 0
        %310 = vmatprep.subr.mxu0 0.0
        %311 = vmatpush1.msra.mxu0 %v295
        %312 = vmatprep.subr.mxu0 0.0
        %313 = vmatpush1.msra.mxu0 %v296
        %314 = vmatprep.subr.mxu0 0.0
        %315 = vmatpush1.msra.mxu0 %v297
        %316 = vmatprep.subr.mxu0 0.0
        %317 = vmatpush1.msra.mxu0 %v298
        %318 = vmatprep.subr.mxu0 0.0
        %319 = vmatpush1.msra.mxu0 0.0
        %320 = vmatprep.subr.mxu0 0.0
        %321 = vmatpush1.msra.mxu0 0.0
        %322 = vmatprep.subr.mxu0 0.0
        %323 = vmatpush1.msra.mxu0 0.0
        %324 = vmatprep.subr.mxu0 0.0
        %325 = vmatpush1.msra.mxu0 0.0
        %326 = vmatprep.subr.mxu0 0.0
        %327 = vmatpush1.msra.mxu0 0.0
        %328 = vmatprep.subr.mxu0 0.0
        %329 = vmatpush1.msra.mxu0 0.0
        %330 = vmatprep.subr.mxu0 0.0
        %331 = vmatpush1.msra.mxu0 0.0
        %332 = vmatprep.subr.mxu0 0.0
        %333 = vmatpush1.msra.mxu0 0.0
        %334 = vmatprep.subr.mxu0 0.0
        %335 = vmatpush1.msra.mxu0 0.0
        %336 = vmatprep.subr.mxu0 0.0
        %337 = vmatpush1.msra.mxu0 0.0
        %338 = vmatprep.subr.mxu0 0.0
        %339 = vmatpush1.msra.mxu0 0.0
        %340 = vmatprep.subr.mxu0 0.0
        %341 = vmatpush1.msra.mxu0 0.0
        %342 = vmatprep.subr.mxu0 0.0
        %343 = vmatpush1.msra.mxu0 0.0
        %344 = vmatprep.subr.mxu0 0.0
        %345 = vmatpush1.msra.mxu0 0.0
        %346 = vmatprep.subr.mxu0 0.0
        %347 = vmatpush1.msra.mxu0 0.0
        %348 = vmatprep.subr.mxu0 0.0
        %349 = vmatpush1.msra.mxu0 0.0
        %350 = vmatprep.subr.mxu0 0.0
        %351 = vmatpush1.msra.mxu0 0.0
        %352 = vmatprep.subr.mxu0 0.0
        %353 = vmatpush1.msra.mxu0 0.0
        %354 = vmatprep.subr.mxu0 0.0
        %355 = vmatpush1.msra.mxu0 0.0
        %356 = vmatprep.subr.mxu0 0.0
        %357 = vmatpush1.msra.mxu0 0.0
        %358 = vmatprep.subr.mxu0 0.0
        %359 = vmatpush1.msra.mxu0 0.0
        %360 = vmatprep.subr.mxu0 0.0
        %361 = vmatpush1.msra.mxu0 0.0
        %362 = vmatprep.subr.mxu0 0.0
        %363 = vmatpush1.msra.mxu0 0.0
        %364 = vmatprep.subr.mxu0 0.0
        %365 = vmatpush1.msra.mxu0 0.0
        %366 = vmatprep.subr.mxu0 0.0
        %367 = vmatpush1.msra.mxu0 0.0
        %368 = vmatprep.subr.mxu0 0.0
        %369 = vmatpush1.msra.mxu0 0.0
        %370 = vmatprep.subr.mxu0 0.0
        %371 = vmatpush1.msra.mxu0 0.0
        %372 = vmatprep.subr.mxu0 0.0
        %373 = vmatpush1.msra.mxu0 0.0
        %374 = vmatprep.mubr.f32.mxu0 0.0
        %375 = vmatmul.mubr.f32.gmra.mrb[0].mxu0 %v308
        %v376 = vpop.f32.mrb[0].mxu0
        %v377 = vadd.f32 %v304, %v376
        %v378 = vpop.f32.mrb[0].mxu0
        %379 = vdwg.mxu0
        %v380 = vmul.f32 %v377, 0.35355338
        %vm381 = vcmask 64512
        %382 = vst.msk [vmem:[%s279] sm:$0xff] %vm381, %v380
        %384 = vrot.lane.b32.xlu0 %v377, 96
        %v385 = vpop.permute.xlu0 %384
        %387 = vst.msk [vmem:[%s286] sm:$0xff] %vm381, %v385
        %388 = vrot.lane.b32.xlu0 %v377, 64
        %v389 = vpop.permute.xlu0 %388
        %391 = vst.msk [vmem:[%s293] sm:$0xff] %vm381, %v389
        %393 = vrot.lane.b32.xlu0 %v380, 120
        %v394 = vpop.permute.xlu0 %393
        %s396 = scalar_lea.vmem %s279, 8 [#allocation7]
        %397 = vst.msk [vmem:[%s396] sm:$0xff] %vm381, %v394
        %398 = vrot.lane.b32.xlu0 %v377, 88
        %v399 = vpop.permute.xlu0 %398
        %s401 = scalar_lea.vmem %s286, 8 [#allocation8]
        %402 = vst.msk [vmem:[%s401] sm:$0xff] %vm381, %v399
        %403 = vrot.lane.b32.xlu0 %v377, 56
        %v404 = vpop.permute.xlu0 %403
        %s406 = scalar_lea.vmem %s293, 8 [#allocation10]
        %407 = vst.msk [vmem:[%s406] sm:$0xff] %vm381, %v404
        %408 = vrot.lane.b32.xlu0 %v380, 112
        %v409 = vpop.permute.xlu0 %408
        %s411 = scalar_lea.vmem %s279, 16 [#allocation7]
        %412 = vst.msk [vmem:[%s411] sm:$0xff] %vm381, %v409
        %413 = vrot.lane.b32.xlu0 %v377, 80
        %v414 = vpop.permute.xlu0 %413
        %s416 = scalar_lea.vmem %s286, 16 [#allocation8]
        %417 = vst.msk [vmem:[%s416] sm:$0xff] %vm381, %v414
        %418 = vrot.lane.b32.xlu0 %v377, 48
        %v419 = vpop.permute.xlu0 %418
        %s421 = scalar_lea.vmem %s293, 16 [#allocation10]
        %422 = vst.msk [vmem:[%s421] sm:$0xff] %vm381, %v419
        %423 = vrot.lane.b32.xlu0 %v380, 104
        %v424 = vpop.permute.xlu0 %423
        %s426 = scalar_lea.vmem %s279, 24 [#allocation7]
        %427 = vst.msk [vmem:[%s426] sm:$0xff] %vm381, %v424
        %428 = vrot.lane.b32.xlu0 %v377, 72
        %v429 = vpop.permute.xlu0 %428
        %s431 = scalar_lea.vmem %s286, 24 [#allocation8]
        %432 = vst.msk [vmem:[%s431] sm:$0xff] %vm381, %v429
        %433 = vrot.lane.b32.xlu0 %v377, 40
        %v434 = vpop.permute.xlu0 %433
        %s436 = scalar_lea.vmem %s293, 24 [#allocation10]
        %437 = vst.msk [vmem:[%s436] sm:$0xff] %vm381, %v434
        %s438 = sand.u32 %s119, 1
        %s439 = scalar_lea.sflag [#allocation4], %s438
        %s440 = sand.u32 %s119, 1
        %s441 = smul.addr %s440, 32
        %s442 = scalar_lea.vmem [#allocation7], %s441
        %s443 = sand.u32 %s27, 1
        %s444 = scalar_lea.sflag [#allocation9], %s443
        %s445 = sand.u32 %s147, 1
        %s446 = smul.addr %s445, 32
        %s447 = scalar_lea.vmem [#allocation8], %s446
        %s448 = sand.u32 %s27, 1
        %s449 = scalar_lea.sflag [#allocation9], %s448
        %s450 = sand.u32 %s175, 1
        %s451 = smul.addr %s450, 32
        %s452 = scalar_lea.vmem [#allocation10], %s451
        // Predicated region
        $region41: #{tpu_custom_call.1} parent=31 // pred_check
          %p453 = pneg %p129
        $region42: #{tpu_custom_call.1} parent=31 // pred_check_branch
          %455 = sbr.rel (%p453) target = $region44
        $region43: #{tpu_custom_call.1} parent=31 // pred_region
          %s457 = ssub.s32 512, 512
          %458 = vsyncadd %s439, %s457
          %s459 = smul.addr %s31, 4
          %s460 = sadd.s32 %s32, %s459
          %s461 = smul.addr %s460, 128
          %s462 = scalar_lea.hbm %s3, %s461
          %s463 = sshll.u32 %s442, 4
          %s464 = int_to_ptr.vmem [resolvable:$true] %s463
          %469 = dma.vmem_to_hbm [thread:$0]  %s464, 512, %s462, %s439, 128, 128, 8
        $region44: #{tpu_custom_call.1} parent=31 // pred_fallthru
          _
        // Predicated region
        $region45: #{tpu_custom_call.1} parent=31 // pred_check
          %p470 = pneg %p157
        $region46: #{tpu_custom_call.1} parent=31 // pred_check_branch
          %472 = sbr.rel (%p470) target = $region48
        $region47: #{tpu_custom_call.1} parent=31 // pred_region
          %s474 = ssub.s32 512, 512
          %475 = vsyncadd %s444, %s474
          %s476 = smul.addr %s31, 4
          %s477 = sadd.s32 %s32, %s476
          %s478 = smul.addr %s477, 128
          %s479 = scalar_lea.hbm %s4, %s478
          %s480 = sshll.u32 %s447, 4
          %s481 = int_to_ptr.vmem [resolvable:$true] %s480
          %486 = dma.vmem_to_hbm [thread:$0]  %s481, 512, %s479, %s444, 128, 128, 8
        $region48: #{tpu_custom_call.1} parent=31 // pred_fallthru
          _
        // Predicated region
        $region49: #{tpu_custom_call.1} parent=31 // pred_check
          %p487 = pneg %p185
        $region50: #{tpu_custom_call.1} parent=31 // pred_check_branch
          %489 = sbr.rel (%p487) target = $region52
        $region51: #{tpu_custom_call.1} parent=31 // pred_region
          %s491 = ssub.s32 512, 512
          %492 = vsyncadd %s449, %s491
          %s493 = smul.addr %s31, 4
          %s494 = sadd.s32 %s32, %s493
          %s495 = smul.addr %s494, 128
          %s496 = scalar_lea.hbm %s5, %s495
          %s497 = sshll.u32 %s452, 4
          %s498 = int_to_ptr.vmem [resolvable:$true] %s497
          %503 = dma.vmem_to_hbm [thread:$0]  %s498, 512, %s496, %s449, 128, 128, 8
        $region52: #{tpu_custom_call.1} parent=31 // pred_fallthru
          _
      $region32: #{tpu_custom_call.1} parent=5 // pred_fallthru
        _
      %p504 = scmp.le.s32.totalorder 2, %s22
      // Predicated region
      $region53: #{tpu_custom_call.1} parent=5 // pred_check
        %p505 = pneg %p504
      $region54: #{tpu_custom_call.1} parent=5 // pred_check_branch
        %507 = sbr.rel (%p505) target = $region56
      $region55: #{tpu_custom_call.1} parent=5 // pred_region
        %s508 = ssub.s32 %s22, 2
        // Predicated region
        $region57: #{tpu_custom_call.1} parent=55 // pred_check
          %p509 = pneg %p135
        $region58: #{tpu_custom_call.1} parent=55 // pred_check_branch
          %511 = sbr.rel (%p509) target = $region60
        $region59: #{tpu_custom_call.1} parent=55 // pred_region
          %s512 = sand.u32 %s120, 1
          %s513 = scalar_lea.sflag [#allocation4], %s512
          %s514 = sand.u32 %s120, 1
          %s515 = smul.addr %s514, 32
          %s516 = scalar_lea.vmem [#allocation7], %s515
          %517 = dma.done %s513, 512
        $region60: #{tpu_custom_call.1} parent=55 // pred_fallthru
          _
        // Predicated region
        $region61: #{tpu_custom_call.1} parent=55 // pred_check
          %p518 = pneg %p163
        $region62: #{tpu_custom_call.1} parent=55 // pred_check_branch
          %520 = sbr.rel (%p518) target = $region64
        $region63: #{tpu_custom_call.1} parent=55 // pred_region
          %s521 = sand.u32 %s28, 1
          %s522 = scalar_lea.sflag [#allocation9], %s521
          %s523 = sand.u32 %s148, 1
          %s524 = smul.addr %s523, 32
          %s525 = scalar_lea.vmem [#allocation8], %s524
          %526 = dma.done %s522, 512
        $region64: #{tpu_custom_call.1} parent=55 // pred_fallthru
          _
        // Predicated region
        $region65: #{tpu_custom_call.1} parent=55 // pred_check
          %p527 = pneg %p191
        $region66: #{tpu_custom_call.1} parent=55 // pred_check_branch
          %529 = sbr.rel (%p527) target = $region68
        $region67: #{tpu_custom_call.1} parent=55 // pred_region
          %s530 = sand.u32 %s28, 1
          %s531 = scalar_lea.sflag [#allocation9], %s530
          %s532 = sand.u32 %s176, 1
          %s533 = smul.addr %s532, 32
          %s534 = scalar_lea.vmem [#allocation10], %s533
          %535 = dma.done %s531, 512
        $region68: #{tpu_custom_call.1} parent=55 // pred_fallthru
          _
      $region56: #{tpu_custom_call.1} parent=5 // pred_fallthru
        _
    $region6: #{tpu_custom_call.1} parent=1 // loop_footer
      %s26 = sadd.s32 1, %s22
    $region7: #{tpu_custom_call.1} parent=1 // loop_footer_branch
      %21 = sbr.rel target = $region3
    $region8: #{tpu_custom_call.1} parent=1 // loop_exit
      _
    %536 = vsyncpa [#allocation3], 1
    %s537 = scalar_lea.sflag [#allocation3], 1
    %538 = vsyncpa %s537, 1
    %539 = vsyncpa [#allocation6], 1
    %540 = vsyncpa [#allocation4], 1
    %s541 = scalar_lea.sflag [#allocation4], 1
    %542 = vsyncpa %s541, 1
    %543 = vsyncpa [#allocation9], 1
    %s544 = scalar_lea.sflag [#allocation9], 1
    %545 = vsyncpa %s544, 1

</llo_original>
